<compile_context>
chip_gen: v6e
topology: v6e:2x2x1
jax: 0.10.0
libtpu: 0.0.40
codegen_flags: <defaults>
</compile_context>

<pallas_src>
import jax
import jax.numpy as jnp
from jax import lax
from jax.experimental import pallas as pl
from jax.experimental.pallas import tpu as pltpu


def _round_up(n: int, m: int) -> int:
    return ((n + m - 1) // m) * m


def _round_down(n: int, m: int) -> int:
    return (n // m) * m


def _vmem_capacity_bytes() -> int:
    # v5e/v6e: 128 MiB per TC, v7x: 64 MiB per TC.  Conservative fallback.
    try:
        return int(pltpu.get_tpu_info().vmem_capacity_bytes)
    except Exception:
        return 64 << 20


# ---------------------------------------------------------------------------
# Small-channel path: dense VPU broadcast-FMA over (Y, X) tiles, W/bias in SMEM.
# ---------------------------------------------------------------------------
def _make_fma_kernel(c_in, c_out, sub_ty, n_full, tail):
    def kernel(x_ref, w_ref, b_ref, o_ref):
        # x_ref: (c_in, ty, tx) VMEM,  w_ref: (c_out, c_in) SMEM f32,
        # b_ref: (c_out,) SMEM f32,    o_ref: (c_out, ty, tx) VMEM.
        def do_chunk(r0, rows):
            for o in range(c_out):
                acc = x_ref[0, pl.ds(r0, rows), :].astype(jnp.float32) * w_ref[o, 0]
                for c in range(1, c_in):
                    acc = acc + x_ref[c, pl.ds(r0, rows), :].astype(jnp.float32) * w_ref[o, c]
                o_ref[o, pl.ds(r0, rows), :] = (acc + b_ref[o]).astype(o_ref.dtype)

        if n_full <= 2:
            for i in range(n_full):
                do_chunk(i * sub_ty, sub_ty)
        else:
            def body(i, carry):
                do_chunk(pl.multiple_of(i * sub_ty, sub_ty), sub_ty)
                return carry
            lax.fori_loop(0, n_full, body, 0)
        if tail:
            do_chunk(n_full * sub_ty, tail)

    return kernel


def _channel_mix_fma(x, w, bias, h_extent):
    """x: (B, H, C, Y, X) -> (B, h_extent, C_out, Y, X); C, C_out <= 8."""
    B, H, C, Y, X = x.shape
    c_out = w.shape[0]
    dtype = x.dtype
    itemsize = jnp.dtype(dtype).itemsize
    vmem_cap = _vmem_capacity_bytes()

    # Lane tile: full X when modest (block dim == array dim is always legal);
    # otherwise a 128-multiple chunk with a ragged last block.
    tx = X if X <= 1024 else 1024

    # Sublane tile: target ~4 MiB (in + out) per grid step within the
    # double-buffering VMEM budget.
    row_bytes = (C + c_out) * _round_up(tx, 128) * itemsize
    tile_budget = min(4 << 20, max(vmem_cap // 6, 512 << 10))
    ty_cap = max(8, tile_budget // max(row_bytes, 1))
    if ty_cap >= Y:
        ty = Y
    else:
        ty = max(8, _round_down(ty_cap, 8))

    # v7x has 2 TensorCores: keep >= 2 parallel grid blocks alive.
    if B * h_extent == 1 and pl.cdiv(Y, ty) == 1 and pl.cdiv(X, tx) == 1:
        if Y > 8:
            ty = max(8, _round_up((Y + 1) // 2, 8))
        elif X > 128:
            tx = max(128, _round_up((X + 1) // 2, 128))

    ny, nx = pl.cdiv(Y, ty), pl.cdiv(X, tx)

    # In-kernel chunking over sublanes bounds live vregs (acc + one slab).
    sub_ty = min(8, ty)
    n_full = ty // sub_ty
    tail = ty - n_full * sub_ty

    kernel = _make_fma_kernel(C, c_out, sub_ty, n_full, tail)

    idx = lambda b, h, yi, xi: (b, h, 0, yi, xi)
    in_specs = [
        pl.BlockSpec((None, None, C, ty, tx), idx),
        pl.BlockSpec(memory_space=pltpu.MemorySpace.SMEM),
        pl.BlockSpec(memory_space=pltpu.MemorySpace.SMEM),
    ]
    out_spec = pl.BlockSpec((None, None, c_out, ty, tx), idx)

    ty_pad, tx_pad = _round_up(ty, 8), _round_up(tx, 128)
    tile_bytes = (C + c_out) * ty_pad * tx_pad * itemsize
    vmem_limit = int(min(max(2 * tile_bytes + (2 << 20), 16 << 20),
                         int(vmem_cap * 0.9)))

    n_frames = B * h_extent
    bytes_accessed = n_frames * (C + c_out) * Y * X * itemsize + (w.size + bias.size) * 4

    # TODO(synk): aggregate several batch elements per grid step when Y*X is
    # tiny and B is large (per-step bytes are currently ~ (C+C_out)*Y*X).
    return pl.pallas_call(
        kernel,
        out_shape=jax.ShapeDtypeStruct((B, h_extent, c_out, Y, X), dtype),
        grid=(B, h_extent, ny, nx),
        in_specs=in_specs,
        out_specs=out_spec,
        compiler_params=pltpu.CompilerParams(
            dimension_semantics=("parallel",) * 4,
            vmem_limit_bytes=vmem_limit,
        ),
        cost_estimate=pl.CostEstimate(
            flops=int(2 * n_frames * Y * X * C * c_out),
            transcendentals=0,
            bytes_accessed=int(bytes_accessed),
        ),
    )(x, w.astype(jnp.float32), bias.astype(jnp.float32))


# ---------------------------------------------------------------------------
# Larger-channel path: MXU matmul  O(c_out, ts) = W(c_out, c_in) @ X(c_in, ts).
# ---------------------------------------------------------------------------
def _mxu_kernel(x_ref, w_ref, b_ref, o_ref):
    # x_ref: (c_in, ts), w_ref: (c_out, c_in), b_ref: (c_out, 1) f32.
    acc = jnp.dot(w_ref[...], x_ref[...], preferred_element_type=jnp.float32)
    o_ref[...] = (acc + b_ref[...]).astype(o_ref.dtype)


def _channel_mix_mxu(x, w, bias, h_extent):
    """x: (B, H, C, Y, X) -> (B, h_extent, C_out, Y, X) via MXU channel mix."""
    B, H, C, Y, X = x.shape
    S = Y * X
    c_out = w.shape[0]
    dtype = x.dtype
    itemsize = jnp.dtype(dtype).itemsize
    vmem_cap = _vmem_capacity_bytes()

    x_flat = x.reshape(B, H, C, S)            # contiguous merge of (Y, X): free

    c_in_pad, c_out_pad = _round_up(C, 8), _round_up(c_out, 8)
    w_bytes = (c_out_pad * _round_up(C, 128) + c_out_pad * 128) * itemsize
    per_lane = (c_in_pad + c_out_pad) * itemsize

    # Lane tile: VMEM-budget derived (double-buffered in+out tiles + resident
    # W must fit), targeting ~4 MiB of traffic per grid step.
    # TODO(synk): tile the channel dims too for very large C (W > ~1/4 VMEM).
    budget = max(vmem_cap - 2 * w_bytes - (8 << 20), 2 << 20)
    ts_budget = max(128, budget // (2 * per_lane))
    ts_target = max(512, (4 << 20) // per_lane)
    ts = max(128, _round_down(min(ts_budget, ts_target), 128))
    ts = min(ts, _round_up(S, 128))

    # v7x has 2 TensorCores: keep >= 2 parallel grid blocks alive.
    if B * h_extent == 1 and pl.cdiv(S, ts) == 1 and S > 128:
        ts = max(128, _round_up(pl.cdiv(S, 2), 128))
    n_s = pl.cdiv(S, ts)

    idx = lambda b, h, s: (b, h, 0, s)
    in_specs = [
        pl.BlockSpec((None, None, C, ts), idx),
        pl.BlockSpec((c_out, C), lambda b, h, s: (0, 0)),
        pl.BlockSpec((c_out, 1), lambda b, h, s: (0, 0)),
    ]
    out_spec = pl.BlockSpec((None, None, c_out, ts), idx)

    vmem_limit = int(min(max(2 * per_lane * ts + 2 * w_bytes + (2 << 20), 16 << 20),
                         int(vmem_cap * 0.9)))

    n_frames = B * h_extent
    bytes_accessed = n_frames * (C + c_out) * S * itemsize + w.size * itemsize + c_out * 4

    y_flat = pl.pallas_call(
        _mxu_kernel,
        out_shape=jax.ShapeDtypeStruct((B, h_extent, c_out, S), dtype),
        grid=(B, h_extent, n_s),
        in_specs=in_specs,
        out_specs=out_spec,
        compiler_params=pltpu.CompilerParams(
            dimension_semantics=("parallel",) * 3,
            vmem_limit_bytes=vmem_limit,
        ),
        cost_estimate=pl.CostEstimate(
            flops=int(2 * n_frames * S * C * c_out),
            transcendentals=0,
            bytes_accessed=int(bytes_accessed),
        ),
    )(x_flat, w, bias.astype(jnp.float32).reshape(c_out, 1))
    return y_flat.reshape(B, h_extent, c_out, Y, X)


# ---------------------------------------------------------------------------
# Adapter forward.
# ---------------------------------------------------------------------------
def simple_model_adapter_forward(x, time, w, bias, *, has_history=False,
                                 time_dependent=False):
    """Reproduces _SimpleModelAdapter.forward with a 1x1-conv inner model.

    x:    (B, H, C, Y, X)
    time: scalar
    w:    (C_out, C)  -- 1x1 conv weight of the wrapped model
    bias: (C_out,)
    returns (B, 1, C_out, Y, X) when has_history=False (x[:, 0] -> y[:, None]),
            (B, H, C_out, Y, X) when has_history=True (model applied per frame).
    """
    # TODO(synk): the real adapter forwards `time` to the wrapped model when
    # time_dependent=True; the synthetic 1x1-conv model ignores it.
    del time, time_dependent

    B, H, C, Y, X = x.shape
    c_out = w.shape[0]
    h_extent = H if has_history else 1

    if C <= 8 and c_out <= 8:
        return _channel_mix_fma(x, w, bias, h_extent)
    return _channel_mix_mxu(x, w, bias, h_extent)


if __name__ == "__main__":
    key = jax.random.PRNGKey(0)
    k_x, k_w, k_b, k_x2, k_w2, k_b2 = jax.random.split(key, 6)

    time = jnp.float32(0.0)  # unused (time_dependent=False)

    # ----- Small-channel (dense VPU/FMA) path, H=2 exercises frame select. -----
    B, H, C, Y, X = 2, 2, 4, 16, 16
    C_OUT = 4
    x = jax.random.normal(k_x, (B, H, C, Y, X), dtype=jnp.float32)
    w = jax.random.normal(k_w, (C_OUT, C), dtype=jnp.float32) * 0.1
    bias = jax.random.normal(k_b, (C_OUT,), dtype=jnp.float32) * 0.01

    # Exact f32 reference (elementwise multiply + sum; no MXU precision ambiguity).
    ref = (x[:, :, None] * w[None, None, :, :, None, None]).sum(axis=3) \
        + bias[None, None, :, None, None]                       # (B, H, C_OUT, Y, X)

    y = jax.block_until_ready(simple_model_adapter_forward(x, time, w, bias))
    assert y.shape == (B, 1, C_OUT, Y, X), y.shape
    assert jnp.allclose(y, ref[:, :1], atol=1e-5, rtol=1e-5)

    y_h = jax.block_until_ready(
        simple_model_adapter_forward(x, time, w, bias, has_history=True))
    assert y_h.shape == (B, H, C_OUT, Y, X), y_h.shape
    assert jnp.allclose(y_h, ref, atol=1e-5, rtol=1e-5)

    # ----- Larger-channel (MXU) path. -----
    C2, C2_OUT = 16, 32
    x2 = jax.random.normal(k_x2, (B, 1, C2, Y, X), dtype=jnp.float32)
    w2 = jax.random.normal(k_w2, (C2_OUT, C2), dtype=jnp.float32) * 0.1
    b2 = jax.random.normal(k_b2, (C2_OUT,), dtype=jnp.float32) * 0.01

    ref2 = (x2[:, :, None] * w2[None, None, :, :, None, None]).sum(axis=3) \
        + b2[None, None, :, None, None]                          # (B, 1, C2_OUT, Y, X)

    y2 = jax.block_until_ready(simple_model_adapter_forward(x2, time, w2, b2))
    assert y2.shape == (B, 1, C2_OUT, Y, X), y2.shape
    # MXU default precision may round f32 inputs to bf16; allow that slack.
    assert jnp.allclose(y2, ref2, atol=2e-2, rtol=2e-2)

    print("KERNEL_OK")
</pallas_src>

<mosaic_0001>
module attributes {stable_mosaic.version = 11 : i64} {
  func.func @kernel(%arg0: i32, %arg1: i32, %arg2: i32, %arg3: i32, %arg4: memref<1x1x4x16x16xf32, #tpu.memory_space<vmem>>, %arg5: memref<4x4xf32, #tpu.memory_space<smem>>, %arg6: memref<4xf32, #tpu.memory_space<smem>>, %arg7: memref<1x1x4x16x16xf32, #tpu.memory_space<vmem>>) attributes {dimension_semantics = [#tpu.dimension_semantics<parallel>, #tpu.dimension_semantics<parallel>, #tpu.dimension_semantics<parallel>, #tpu.dimension_semantics<parallel>], iteration_bounds = array<i64: 2, 1, 1, 1>, scalar_prefetch = 0 : i64, scratch_operands = 0 : i64, tpu.core_type = #tpu.core_type<tc>, window_params = [{transform_indices = @transform_0, window_bounds = array<i64: 1, 1, 4, 16, 16>}, {transform_indices = @transform_1, window_bounds = array<i64: 4, 4>}, {transform_indices = @transform_2, window_bounds = array<i64: 4>}, {transform_indices = @transform_3, window_bounds = array<i64: 1, 1, 4, 16, 16>}]} {
    %c0 = arith.constant 0 : index
    %c0_0 = arith.constant 0 : index
    %c0_1 = arith.constant 0 : index
    %c0_2 = arith.constant 0 : index
    %c0_3 = arith.constant 0 : index
    %0 = vector.load %arg4[%c0, %c0_0, %c0_1, %c0_2, %c0_3] : memref<1x1x4x16x16xf32, #tpu.memory_space<vmem>>, vector<1x1x1x8x16xf32>
    %1 = vector.shape_cast %0 : vector<1x1x1x8x16xf32> to vector<8x16xf32>
    %c0_4 = arith.constant 0 : index
    %c0_5 = arith.constant 0 : index
    %2 = memref.load %arg5[%c0_4, %c0_5] : memref<4x4xf32, #tpu.memory_space<smem>>
    %3 = vector.broadcast %2 : f32 to vector<8x16xf32>
    %4 = arith.mulf %1, %3 : vector<8x16xf32>
    %c0_6 = arith.constant 0 : index
    %c0_7 = arith.constant 0 : index
    %c1 = arith.constant 1 : index
    %c0_8 = arith.constant 0 : index
    %c0_9 = arith.constant 0 : index
    %5 = vector.load %arg4[%c0_6, %c0_7, %c1, %c0_8, %c0_9] : memref<1x1x4x16x16xf32, #tpu.memory_space<vmem>>, vector<1x1x1x8x16xf32>
    %6 = vector.shape_cast %5 : vector<1x1x1x8x16xf32> to vector<8x16xf32>
    %c0_10 = arith.constant 0 : index
    %c1_11 = arith.constant 1 : index
    %7 = memref.load %arg5[%c0_10, %c1_11] : memref<4x4xf32, #tpu.memory_space<smem>>
    %8 = vector.broadcast %7 : f32 to vector<8x16xf32>
    %9 = arith.mulf %6, %8 : vector<8x16xf32>
    %10 = arith.addf %4, %9 : vector<8x16xf32>
    %c0_12 = arith.constant 0 : index
    %c0_13 = arith.constant 0 : index
    %c2 = arith.constant 2 : index
    %c0_14 = arith.constant 0 : index
    %c0_15 = arith.constant 0 : index
    %11 = vector.load %arg4[%c0_12, %c0_13, %c2, %c0_14, %c0_15] : memref<1x1x4x16x16xf32, #tpu.memory_space<vmem>>, vector<1x1x1x8x16xf32>
    %12 = vector.shape_cast %11 : vector<1x1x1x8x16xf32> to vector<8x16xf32>
    %c0_16 = arith.constant 0 : index
    %c2_17 = arith.constant 2 : index
    %13 = memref.load %arg5[%c0_16, %c2_17] : memref<4x4xf32, #tpu.memory_space<smem>>
    %14 = vector.broadcast %13 : f32 to vector<8x16xf32>
    %15 = arith.mulf %12, %14 : vector<8x16xf32>
    %16 = arith.addf %10, %15 : vector<8x16xf32>
    %c0_18 = arith.constant 0 : index
    %c0_19 = arith.constant 0 : index
    %c3 = arith.constant 3 : index
    %c0_20 = arith.constant 0 : index
    %c0_21 = arith.constant 0 : index
    %17 = vector.load %arg4[%c0_18, %c0_19, %c3, %c0_20, %c0_21] : memref<1x1x4x16x16xf32, #tpu.memory_space<vmem>>, vector<1x1x1x8x16xf32>
    %18 = vector.shape_cast %17 : vector<1x1x1x8x16xf32> to vector<8x16xf32>
    %c0_22 = arith.constant 0 : index
    %c3_23 = arith.constant 3 : index
    %19 = memref.load %arg5[%c0_22, %c3_23] : memref<4x4xf32, #tpu.memory_space<smem>>
    %20 = vector.broadcast %19 : f32 to vector<8x16xf32>
    %21 = arith.mulf %18, %20 : vector<8x16xf32>
    %22 = arith.addf %16, %21 : vector<8x16xf32>
    %c0_24 = arith.constant 0 : index
    %23 = memref.load %arg6[%c0_24] : memref<4xf32, #tpu.memory_space<smem>>
    %24 = vector.broadcast %23 : f32 to vector<8x16xf32>
    %25 = arith.addf %22, %24 : vector<8x16xf32>
    %c0_25 = arith.constant 0 : index
    %c0_26 = arith.constant 0 : index
    %c0_27 = arith.constant 0 : index
    %c0_28 = arith.constant 0 : index
    %c0_29 = arith.constant 0 : index
    %26 = vector.load %arg7[%c0_25, %c0_26, %c0_27, %c0_28, %c0_29] : memref<1x1x4x16x16xf32, #tpu.memory_space<vmem>>, vector<1x1x1x8x16xf32>
    %27 = vector.shape_cast %26 : vector<1x1x1x8x16xf32> to vector<8x16xf32>
    %28 = vector.shape_cast %25 : vector<8x16xf32> to vector<1x1x1x8x16xf32>
    tpu.vector_store %arg7[%c0_25, %c0_26, %c0_27, %c0_28, %c0_29], %28 {strides = array<i32>} : memref<1x1x4x16x16xf32, #tpu.memory_space<vmem>>, vector<1x1x1x8x16xf32>,
    %c0_30 = arith.constant 0 : index
    %c0_31 = arith.constant 0 : index
    %c0_32 = arith.constant 0 : index
    %c0_33 = arith.constant 0 : index
    %c0_34 = arith.constant 0 : index
    %29 = vector.load %arg4[%c0_30, %c0_31, %c0_32, %c0_33, %c0_34] : memref<1x1x4x16x16xf32, #tpu.memory_space<vmem>>, vector<1x1x1x8x16xf32>
    %30 = vector.shape_cast %29 : vector<1x1x1x8x16xf32> to vector<8x16xf32>
    %c1_35 = arith.constant 1 : index
    %c0_36 = arith.constant 0 : index
    %31 = memref.load %arg5[%c1_35, %c0_36] : memref<4x4xf32, #tpu.memory_space<smem>>
    %32 = vector.broadcast %31 : f32 to vector<8x16xf32>
    %33 = arith.mulf %30, %32 : vector<8x16xf32>
    %c0_37 = arith.constant 0 : index
    %c0_38 = arith.constant 0 : index
    %c1_39 = arith.constant 1 : index
    %c0_40 = arith.constant 0 : index
    %c0_41 = arith.constant 0 : index
    %34 = vector.load %arg4[%c0_37, %c0_38, %c1_39, %c0_40, %c0_41] : memref<1x1x4x16x16xf32, #tpu.memory_space<vmem>>, vector<1x1x1x8x16xf32>
    %35 = vector.shape_cast %34 : vector<1x1x1x8x16xf32> to vector<8x16xf32>
    %c1_42 = arith.constant 1 : index
    %c1_43 = arith.constant 1 : index
    %36 = memref.load %arg5[%c1_42, %c1_43] : memref<4x4xf32, #tpu.memory_space<smem>>
    %37 = vector.broadcast %36 : f32 to vector<8x16xf32>
    %38 = arith.mulf %35, %37 : vector<8x16xf32>
    %39 = arith.addf %33, %38 : vector<8x16xf32>
    %c0_44 = arith.constant 0 : index
    %c0_45 = arith.constant 0 : index
    %c2_46 = arith.constant 2 : index
    %c0_47 = arith.constant 0 : index
    %c0_48 = arith.constant 0 : index
    %40 = vector.load %arg4[%c0_44, %c0_45, %c2_46, %c0_47, %c0_48] : memref<1x1x4x16x16xf32, #tpu.memory_space<vmem>>, vector<1x1x1x8x16xf32>
    %41 = vector.shape_cast %40 : vector<1x1x1x8x16xf32> to vector<8x16xf32>
    %c1_49 = arith.constant 1 : index
    %c2_50 = arith.constant 2 : index
    %42 = memref.load %arg5[%c1_49, %c2_50] : memref<4x4xf32, #tpu.memory_space<smem>>
    %43 = vector.broadcast %42 : f32 to vector<8x16xf32>
    %44 = arith.mulf %41, %43 : vector<8x16xf32>
    %45 = arith.addf %39, %44 : vector<8x16xf32>
    %c0_51 = arith.constant 0 : index
    %c0_52 = arith.constant 0 : index
    %c3_53 = arith.constant 3 : index
    %c0_54 = arith.constant 0 : index
    %c0_55 = arith.constant 0 : index
    %46 = vector.load %arg4[%c0_51, %c0_52, %c3_53, %c0_54, %c0_55] : memref<1x1x4x16x16xf32, #tpu.memory_space<vmem>>, vector<1x1x1x8x16xf32>
    %47 = vector.shape_cast %46 : vector<1x1x1x8x16xf32> to vector<8x16xf32>
    %c1_56 = arith.constant 1 : index
    %c3_57 = arith.constant 3 : index
    %48 = memref.load %arg5[%c1_56, %c3_57] : memref<4x4xf32, #tpu.memory_space<smem>>
    %49 = vector.broadcast %48 : f32 to vector<8x16xf32>
    %50 = arith.mulf %47, %49 : vector<8x16xf32>
    %51 = arith.addf %45, %50 : vector<8x16xf32>
    %c1_58 = arith.constant 1 : index
    %52 = memref.load %arg6[%c1_58] : memref<4xf32, #tpu.memory_space<smem>>
    %53 = vector.broadcast %52 : f32 to vector<8x16xf32>
    %54 = arith.addf %51, %53 : vector<8x16xf32>
    %c0_59 = arith.constant 0 : index
    %c0_60 = arith.constant 0 : index
    %c1_61 = arith.constant 1 : index
    %c0_62 = arith.constant 0 : index
    %c0_63 = arith.constant 0 : index
    %55 = vector.load %arg7[%c0_59, %c0_60, %c1_61, %c0_62, %c0_63] : memref<1x1x4x16x16xf32, #tpu.memory_space<vmem>>, vector<1x1x1x8x16xf32>
    %56 = vector.shape_cast %55 : vector<1x1x1x8x16xf32> to vector<8x16xf32>
    %57 = vector.shape_cast %54 : vector<8x16xf32> to vector<1x1x1x8x16xf32>
    tpu.vector_store %arg7[%c0_59, %c0_60, %c1_61, %c0_62, %c0_63], %57 {strides = array<i32>} : memref<1x1x4x16x16xf32, #tpu.memory_space<vmem>>, vector<1x1x1x8x16xf32>,
    %c0_64 = arith.constant 0 : index
    %c0_65 = arith.constant 0 : index
    %c0_66 = arith.constant 0 : index
    %c0_67 = arith.constant 0 : index
    %c0_68 = arith.constant 0 : index
    %58 = vector.load %arg4[%c0_64, %c0_65, %c0_66, %c0_67, %c0_68] : memref<1x1x4x16x16xf32, #tpu.memory_space<vmem>>, vector<1x1x1x8x16xf32>
    %59 = vector.shape_cast %58 : vector<1x1x1x8x16xf32> to vector<8x16xf32>
    %c2_69 = arith.constant 2 : index
    %c0_70 = arith.constant 0 : index
    %60 = memref.load %arg5[%c2_69, %c0_70] : memref<4x4xf32, #tpu.memory_space<smem>>
    %61 = vector.broadcast %60 : f32 to vector<8x16xf32>
    %62 = arith.mulf %59, %61 : vector<8x16xf32>
    %c0_71 = arith.constant 0 : index
    %c0_72 = arith.constant 0 : index
    %c1_73 = arith.constant 1 : index
    %c0_74 = arith.constant 0 : index
    %c0_75 = arith.constant 0 : index
    %63 = vector.load %arg4[%c0_71, %c0_72, %c1_73, %c0_74, %c0_75] : memref<1x1x4x16x16xf32, #tpu.memory_space<vmem>>, vector<1x1x1x8x16xf32>
    %64 = vector.shape_cast %63 : vector<1x1x1x8x16xf32> to vector<8x16xf32>
    %c2_76 = arith.constant 2 : index
    %c1_77 = arith.constant 1 : index
    %65 = memref.load %arg5[%c2_76, %c1_77] : memref<4x4xf32, #tpu.memory_space<smem>>
    %66 = vector.broadcast %65 : f32 to vector<8x16xf32>
    %67 = arith.mulf %64, %66 : vector<8x16xf32>
    %68 = arith.addf %62, %67 : vector<8x16xf32>
    %c0_78 = arith.constant 0 : index
    %c0_79 = arith.constant 0 : index
    %c2_80 = arith.constant 2 : index
    %c0_81 = arith.constant 0 : index
    %c0_82 = arith.constant 0 : index
    %69 = vector.load %arg4[%c0_78, %c0_79, %c2_80, %c0_81, %c0_82] : memref<1x1x4x16x16xf32, #tpu.memory_space<vmem>>, vector<1x1x1x8x16xf32>
    %70 = vector.shape_cast %69 : vector<1x1x1x8x16xf32> to vector<8x16xf32>
    %c2_83 = arith.constant 2 : index
    %c2_84 = arith.constant 2 : index
    %71 = memref.load %arg5[%c2_83, %c2_84] : memref<4x4xf32, #tpu.memory_space<smem>>
    %72 = vector.broadcast %71 : f32 to vector<8x16xf32>
    %73 = arith.mulf %70, %72 : vector<8x16xf32>
    %74 = arith.addf %68, %73 : vector<8x16xf32>
    %c0_85 = arith.constant 0 : index
    %c0_86 = arith.constant 0 : index
    %c3_87 = arith.constant 3 : index
    %c0_88 = arith.constant 0 : index
    %c0_89 = arith.constant 0 : index
    %75 = vector.load %arg4[%c0_85, %c0_86, %c3_87, %c0_88, %c0_89] : memref<1x1x4x16x16xf32, #tpu.memory_space<vmem>>, vector<1x1x1x8x16xf32>
    %76 = vector.shape_cast %75 : vector<1x1x1x8x16xf32> to vector<8x16xf32>
    %c2_90 = arith.constant 2 : index
    %c3_91 = arith.constant 3 : index
    %77 = memref.load %arg5[%c2_90, %c3_91] : memref<4x4xf32, #tpu.memory_space<smem>>
    %78 = vector.broadcast %77 : f32 to vector<8x16xf32>
    %79 = arith.mulf %76, %78 : vector<8x16xf32>
    %80 = arith.addf %74, %79 : vector<8x16xf32>
    %c2_92 = arith.constant 2 : index
    %81 = memref.load %arg6[%c2_92] : memref<4xf32, #tpu.memory_space<smem>>
    %82 = vector.broadcast %81 : f32 to vector<8x16xf32>
    %83 = arith.addf %80, %82 : vector<8x16xf32>
    %c0_93 = arith.constant 0 : index
    %c0_94 = arith.constant 0 : index
    %c2_95 = arith.constant 2 : index
    %c0_96 = arith.constant 0 : index
    %c0_97 = arith.constant 0 : index
    %84 = vector.load %arg7[%c0_93, %c0_94, %c2_95, %c0_96, %c0_97] : memref<1x1x4x16x16xf32, #tpu.memory_space<vmem>>, vector<1x1x1x8x16xf32>
    %85 = vector.shape_cast %84 : vector<1x1x1x8x16xf32> to vector<8x16xf32>
    %86 = vector.shape_cast %83 : vector<8x16xf32> to vector<1x1x1x8x16xf32>
    tpu.vector_store %arg7[%c0_93, %c0_94, %c2_95, %c0_96, %c0_97], %86 {strides = array<i32>} : memref<1x1x4x16x16xf32, #tpu.memory_space<vmem>>, vector<1x1x1x8x16xf32>,
    %c0_98 = arith.constant 0 : index
    %c0_99 = arith.constant 0 : index
    %c0_100 = arith.constant 0 : index
    %c0_101 = arith.constant 0 : index
    %c0_102 = arith.constant 0 : index
    %87 = vector.load %arg4[%c0_98, %c0_99, %c0_100, %c0_101, %c0_102] : memref<1x1x4x16x16xf32, #tpu.memory_space<vmem>>, vector<1x1x1x8x16xf32>
    %88 = vector.shape_cast %87 : vector<1x1x1x8x16xf32> to vector<8x16xf32>
    %c3_103 = arith.constant 3 : index
    %c0_104 = arith.constant 0 : index
    %89 = memref.load %arg5[%c3_103, %c0_104] : memref<4x4xf32, #tpu.memory_space<smem>>
    %90 = vector.broadcast %89 : f32 to vector<8x16xf32>
    %91 = arith.mulf %88, %90 : vector<8x16xf32>
    %c0_105 = arith.constant 0 : index
    %c0_106 = arith.constant 0 : index
    %c1_107 = arith.constant 1 : index
    %c0_108 = arith.constant 0 : index
    %c0_109 = arith.constant 0 : index
    %92 = vector.load %arg4[%c0_105, %c0_106, %c1_107, %c0_108, %c0_109] : memref<1x1x4x16x16xf32, #tpu.memory_space<vmem>>, vector<1x1x1x8x16xf32>
    %93 = vector.shape_cast %92 : vector<1x1x1x8x16xf32> to vector<8x16xf32>
    %c3_110 = arith.constant 3 : index
    %c1_111 = arith.constant 1 : index
    %94 = memref.load %arg5[%c3_110, %c1_111] : memref<4x4xf32, #tpu.memory_space<smem>>
    %95 = vector.broadcast %94 : f32 to vector<8x16xf32>
    %96 = arith.mulf %93, %95 : vector<8x16xf32>
    %97 = arith.addf %91, %96 : vector<8x16xf32>
    %c0_112 = arith.constant 0 : index
    %c0_113 = arith.constant 0 : index
    %c2_114 = arith.constant 2 : index
    %c0_115 = arith.constant 0 : index
    %c0_116 = arith.constant 0 : index
    %98 = vector.load %arg4[%c0_112, %c0_113, %c2_114, %c0_115, %c0_116] : memref<1x1x4x16x16xf32, #tpu.memory_space<vmem>>, vector<1x1x1x8x16xf32>
    %99 = vector.shape_cast %98 : vector<1x1x1x8x16xf32> to vector<8x16xf32>
    %c3_117 = arith.constant 3 : index
    %c2_118 = arith.constant 2 : index
    %100 = memref.load %arg5[%c3_117, %c2_118] : memref<4x4xf32, #tpu.memory_space<smem>>
    %101 = vector.broadcast %100 : f32 to vector<8x16xf32>
    %102 = arith.mulf %99, %101 : vector<8x16xf32>
    %103 = arith.addf %97, %102 : vector<8x16xf32>
    %c0_119 = arith.constant 0 : index
    %c0_120 = arith.constant 0 : index
    %c3_121 = arith.constant 3 : index
    %c0_122 = arith.constant 0 : index
    %c0_123 = arith.constant 0 : index
    %104 = vector.load %arg4[%c0_119, %c0_120, %c3_121, %c0_122, %c0_123] : memref<1x1x4x16x16xf32, #tpu.memory_space<vmem>>, vector<1x1x1x8x16xf32>
    %105 = vector.shape_cast %104 : vector<1x1x1x8x16xf32> to vector<8x16xf32>
    %c3_124 = arith.constant 3 : index
    %c3_125 = arith.constant 3 : index
    %106 = memref.load %arg5[%c3_124, %c3_125] : memref<4x4xf32, #tpu.memory_space<smem>>
    %107 = vector.broadcast %106 : f32 to vector<8x16xf32>
    %108 = arith.mulf %105, %107 : vector<8x16xf32>
    %109 = arith.addf %103, %108 : vector<8x16xf32>
    %c3_126 = arith.constant 3 : index
    %110 = memref.load %arg6[%c3_126] : memref<4xf32, #tpu.memory_space<smem>>
    %111 = vector.broadcast %110 : f32 to vector<8x16xf32>
    %112 = arith.addf %109, %111 : vector<8x16xf32>
    %c0_127 = arith.constant 0 : index
    %c0_128 = arith.constant 0 : index
    %c3_129 = arith.constant 3 : index
    %c0_130 = arith.constant 0 : index
    %c0_131 = arith.constant 0 : index
    %113 = vector.load %arg7[%c0_127, %c0_128, %c3_129, %c0_130, %c0_131] : memref<1x1x4x16x16xf32, #tpu.memory_space<vmem>>, vector<1x1x1x8x16xf32>
    %114 = vector.shape_cast %113 : vector<1x1x1x8x16xf32> to vector<8x16xf32>
    %115 = vector.shape_cast %112 : vector<8x16xf32> to vector<1x1x1x8x16xf32>
    tpu.vector_store %arg7[%c0_127, %c0_128, %c3_129, %c0_130, %c0_131], %115 {strides = array<i32>} : memref<1x1x4x16x16xf32, #tpu.memory_space<vmem>>, vector<1x1x1x8x16xf32>,
    %c0_132 = arith.constant 0 : index
    %c0_133 = arith.constant 0 : index
    %c0_134 = arith.constant 0 : index
    %c8 = arith.constant 8 : index
    %c0_135 = arith.constant 0 : index
    %116 = vector.load %arg4[%c0_132, %c0_133, %c0_134, %c8, %c0_135] : memref<1x1x4x16x16xf32, #tpu.memory_space<vmem>>, vector<1x1x1x8x16xf32>
    %117 = vector.shape_cast %116 : vector<1x1x1x8x16xf32> to vector<8x16xf32>
    %c0_136 = arith.constant 0 : index
    %c0_137 = arith.constant 0 : index
    %118 = memref.load %arg5[%c0_136, %c0_137] : memref<4x4xf32, #tpu.memory_space<smem>>
    %119 = vector.broadcast %118 : f32 to vector<8x16xf32>
    %120 = arith.mulf %117, %119 : vector<8x16xf32>
    %c0_138 = arith.constant 0 : index
    %c0_139 = arith.constant 0 : index
    %c1_140 = arith.constant 1 : index
    %c8_141 = arith.constant 8 : index
    %c0_142 = arith.constant 0 : index
    %121 = vector.load %arg4[%c0_138, %c0_139, %c1_140, %c8_141, %c0_142] : memref<1x1x4x16x16xf32, #tpu.memory_space<vmem>>, vector<1x1x1x8x16xf32>
    %122 = vector.shape_cast %121 : vector<1x1x1x8x16xf32> to vector<8x16xf32>
    %c0_143 = arith.constant 0 : index
    %c1_144 = arith.constant 1 : index
    %123 = memref.load %arg5[%c0_143, %c1_144] : memref<4x4xf32, #tpu.memory_space<smem>>
    %124 = vector.broadcast %123 : f32 to vector<8x16xf32>
    %125 = arith.mulf %122, %124 : vector<8x16xf32>
    %126 = arith.addf %120, %125 : vector<8x16xf32>
    %c0_145 = arith.constant 0 : index
    %c0_146 = arith.constant 0 : index
    %c2_147 = arith.constant 2 : index
    %c8_148 = arith.constant 8 : index
    %c0_149 = arith.constant 0 : index
    %127 = vector.load %arg4[%c0_145, %c0_146, %c2_147, %c8_148, %c0_149] : memref<1x1x4x16x16xf32, #tpu.memory_space<vmem>>, vector<1x1x1x8x16xf32>
    %128 = vector.shape_cast %127 : vector<1x1x1x8x16xf32> to vector<8x16xf32>
    %c0_150 = arith.constant 0 : index
    %c2_151 = arith.constant 2 : index
    %129 = memref.load %arg5[%c0_150, %c2_151] : memref<4x4xf32, #tpu.memory_space<smem>>
    %130 = vector.broadcast %129 : f32 to vector<8x16xf32>
    %131 = arith.mulf %128, %130 : vector<8x16xf32>
    %132 = arith.addf %126, %131 : vector<8x16xf32>
    %c0_152 = arith.constant 0 : index
    %c0_153 = arith.constant 0 : index
    %c3_154 = arith.constant 3 : index
    %c8_155 = arith.constant 8 : index
    %c0_156 = arith.constant 0 : index
    %133 = vector.load %arg4[%c0_152, %c0_153, %c3_154, %c8_155, %c0_156] : memref<1x1x4x16x16xf32, #tpu.memory_space<vmem>>, vector<1x1x1x8x16xf32>
    %134 = vector.shape_cast %133 : vector<1x1x1x8x16xf32> to vector<8x16xf32>
    %c0_157 = arith.constant 0 : index
    %c3_158 = arith.constant 3 : index
    %135 = memref.load %arg5[%c0_157, %c3_158] : memref<4x4xf32, #tpu.memory_space<smem>>
    %136 = vector.broadcast %135 : f32 to vector<8x16xf32>
    %137 = arith.mulf %134, %136 : vector<8x16xf32>
    %138 = arith.addf %132, %137 : vector<8x16xf32>
    %c0_159 = arith.constant 0 : index
    %139 = memref.load %arg6[%c0_159] : memref<4xf32, #tpu.memory_space<smem>>
    %140 = vector.broadcast %139 : f32 to vector<8x16xf32>
    %141 = arith.addf %138, %140 : vector<8x16xf32>
    %c0_160 = arith.constant 0 : index
    %c0_161 = arith.constant 0 : index
    %c0_162 = arith.constant 0 : index
    %c8_163 = arith.constant 8 : index
    %c0_164 = arith.constant 0 : index
    %142 = vector.load %arg7[%c0_160, %c0_161, %c0_162, %c8_163, %c0_164] : memref<1x1x4x16x16xf32, #tpu.memory_space<vmem>>, vector<1x1x1x8x16xf32>
    %143 = vector.shape_cast %142 : vector<1x1x1x8x16xf32> to vector<8x16xf32>
    %144 = vector.shape_cast %141 : vector<8x16xf32> to vector<1x1x1x8x16xf32>
    tpu.vector_store %arg7[%c0_160, %c0_161, %c0_162, %c8_163, %c0_164], %144 {strides = array<i32>} : memref<1x1x4x16x16xf32, #tpu.memory_space<vmem>>, vector<1x1x1x8x16xf32>,
    %c0_165 = arith.constant 0 : index
    %c0_166 = arith.constant 0 : index
    %c0_167 = arith.constant 0 : index
    %c8_168 = arith.constant 8 : index
    %c0_169 = arith.constant 0 : index
    %145 = vector.load %arg4[%c0_165, %c0_166, %c0_167, %c8_168, %c0_169] : memref<1x1x4x16x16xf32, #tpu.memory_space<vmem>>, vector<1x1x1x8x16xf32>
    %146 = vector.shape_cast %145 : vector<1x1x1x8x16xf32> to vector<8x16xf32>
    %c1_170 = arith.constant 1 : index
    %c0_171 = arith.constant 0 : index
    %147 = memref.load %arg5[%c1_170, %c0_171] : memref<4x4xf32, #tpu.memory_space<smem>>
    %148 = vector.broadcast %147 : f32 to vector<8x16xf32>
    %149 = arith.mulf %146, %148 : vector<8x16xf32>
    %c0_172 = arith.constant 0 : index
    %c0_173 = arith.constant 0 : index
    %c1_174 = arith.constant 1 : index
    %c8_175 = arith.constant 8 : index
    %c0_176 = arith.constant 0 : index
    %150 = vector.load %arg4[%c0_172, %c0_173, %c1_174, %c8_175, %c0_176] : memref<1x1x4x16x16xf32, #tpu.memory_space<vmem>>, vector<1x1x1x8x16xf32>
    %151 = vector.shape_cast %150 : vector<1x1x1x8x16xf32> to vector<8x16xf32>
    %c1_177 = arith.constant 1 : index
    %c1_178 = arith.constant 1 : index
    %152 = memref.load %arg5[%c1_177, %c1_178] : memref<4x4xf32, #tpu.memory_space<smem>>
    %153 = vector.broadcast %152 : f32 to vector<8x16xf32>
    %154 = arith.mulf %151, %153 : vector<8x16xf32>
    %155 = arith.addf %149, %154 : vector<8x16xf32>
    %c0_179 = arith.constant 0 : index
    %c0_180 = arith.constant 0 : index
    %c2_181 = arith.constant 2 : index
    %c8_182 = arith.constant 8 : index
    %c0_183 = arith.constant 0 : index
    %156 = vector.load %arg4[%c0_179, %c0_180, %c2_181, %c8_182, %c0_183] : memref<1x1x4x16x16xf32, #tpu.memory_space<vmem>>, vector<1x1x1x8x16xf32>
    %157 = vector.shape_cast %156 : vector<1x1x1x8x16xf32> to vector<8x16xf32>
    %c1_184 = arith.constant 1 : index
    %c2_185 = arith.constant 2 : index
    %158 = memref.load %arg5[%c1_184, %c2_185] : memref<4x4xf32, #tpu.memory_space<smem>>
    %159 = vector.broadcast %158 : f32 to vector<8x16xf32>
    %160 = arith.mulf %157, %159 : vector<8x16xf32>
    %161 = arith.addf %155, %160 : vector<8x16xf32>
    %c0_186 = arith.constant 0 : index
    %c0_187 = arith.constant 0 : index
    %c3_188 = arith.constant 3 : index
    %c8_189 = arith.constant 8 : index
    %c0_190 = arith.constant 0 : index
    %162 = vector.load %arg4[%c0_186, %c0_187, %c3_188, %c8_189, %c0_190] : memref<1x1x4x16x16xf32, #tpu.memory_space<vmem>>, vector<1x1x1x8x16xf32>
    %163 = vector.shape_cast %162 : vector<1x1x1x8x16xf32> to vector<8x16xf32>
    %c1_191 = arith.constant 1 : index
    %c3_192 = arith.constant 3 : index
    %164 = memref.load %arg5[%c1_191, %c3_192] : memref<4x4xf32, #tpu.memory_space<smem>>
    %165 = vector.broadcast %164 : f32 to vector<8x16xf32>
    %166 = arith.mulf %163, %165 : vector<8x16xf32>
    %167 = arith.addf %161, %166 : vector<8x16xf32>
    %c1_193 = arith.constant 1 : index
    %168 = memref.load %arg6[%c1_193] : memref<4xf32, #tpu.memory_space<smem>>
    %169 = vector.broadcast %168 : f32 to vector<8x16xf32>
    %170 = arith.addf %167, %169 : vector<8x16xf32>
    %c0_194 = arith.constant 0 : index
    %c0_195 = arith.constant 0 : index
    %c1_196 = arith.constant 1 : index
    %c8_197 = arith.constant 8 : index
    %c0_198 = arith.constant 0 : index
    %171 = vector.load %arg7[%c0_194, %c0_195, %c1_196, %c8_197, %c0_198] : memref<1x1x4x16x16xf32, #tpu.memory_space<vmem>>, vector<1x1x1x8x16xf32>
    %172 = vector.shape_cast %171 : vector<1x1x1x8x16xf32> to vector<8x16xf32>
    %173 = vector.shape_cast %170 : vector<8x16xf32> to vector<1x1x1x8x16xf32>
    tpu.vector_store %arg7[%c0_194, %c0_195, %c1_196, %c8_197, %c0_198], %173 {strides = array<i32>} : memref<1x1x4x16x16xf32, #tpu.memory_space<vmem>>, vector<1x1x1x8x16xf32>,
    %c0_199 = arith.constant 0 : index
    %c0_200 = arith.constant 0 : index
    %c0_201 = arith.constant 0 : index
    %c8_202 = arith.constant 8 : index
    %c0_203 = arith.constant 0 : index
    %174 = vector.load %arg4[%c0_199, %c0_200, %c0_201, %c8_202, %c0_203] : memref<1x1x4x16x16xf32, #tpu.memory_space<vmem>>, vector<1x1x1x8x16xf32>
    %175 = vector.shape_cast %174 : vector<1x1x1x8x16xf32> to vector<8x16xf32>
    %c2_204 = arith.constant 2 : index
    %c0_205 = arith.constant 0 : index
    %176 = memref.load %arg5[%c2_204, %c0_205] : memref<4x4xf32, #tpu.memory_space<smem>>
    %177 = vector.broadcast %176 : f32 to vector<8x16xf32>
    %178 = arith.mulf %175, %177 : vector<8x16xf32>
    %c0_206 = arith.constant 0 : index
    %c0_207 = arith.constant 0 : index
    %c1_208 = arith.constant 1 : index
    %c8_209 = arith.constant 8 : index
    %c0_210 = arith.constant 0 : index
    %179 = vector.load %arg4[%c0_206, %c0_207, %c1_208, %c8_209, %c0_210] : memref<1x1x4x16x16xf32, #tpu.memory_space<vmem>>, vector<1x1x1x8x16xf32>
    %180 = vector.shape_cast %179 : vector<1x1x1x8x16xf32> to vector<8x16xf32>
    %c2_211 = arith.constant 2 : index
    %c1_212 = arith.constant 1 : index
    %181 = memref.load %arg5[%c2_211, %c1_212] : memref<4x4xf32, #tpu.memory_space<smem>>
    %182 = vector.broadcast %181 : f32 to vector<8x16xf32>
    %183 = arith.mulf %180, %182 : vector<8x16xf32>
    %184 = arith.addf %178, %183 : vector<8x16xf32>
    %c0_213 = arith.constant 0 : index
    %c0_214 = arith.constant 0 : index
    %c2_215 = arith.constant 2 : index
    %c8_216 = arith.constant 8 : index
    %c0_217 = arith.constant 0 : index
    %185 = vector.load %arg4[%c0_213, %c0_214, %c2_215, %c8_216, %c0_217] : memref<1x1x4x16x16xf32, #tpu.memory_space<vmem>>, vector<1x1x1x8x16xf32>
    %186 = vector.shape_cast %185 : vector<1x1x1x8x16xf32> to vector<8x16xf32>
    %c2_218 = arith.constant 2 : index
    %c2_219 = arith.constant 2 : index
    %187 = memref.load %arg5[%c2_218, %c2_219] : memref<4x4xf32, #tpu.memory_space<smem>>
    %188 = vector.broadcast %187 : f32 to vector<8x16xf32>
    %189 = arith.mulf %186, %188 : vector<8x16xf32>
    %190 = arith.addf %184, %189 : vector<8x16xf32>
    %c0_220 = arith.constant 0 : index
    %c0_221 = arith.constant 0 : index
    %c3_222 = arith.constant 3 : index
    %c8_223 = arith.constant 8 : index
    %c0_224 = arith.constant 0 : index
    %191 = vector.load %arg4[%c0_220, %c0_221, %c3_222, %c8_223, %c0_224] : memref<1x1x4x16x16xf32, #tpu.memory_space<vmem>>, vector<1x1x1x8x16xf32>
    %192 = vector.shape_cast %191 : vector<1x1x1x8x16xf32> to vector<8x16xf32>
    %c2_225 = arith.constant 2 : index
    %c3_226 = arith.constant 3 : index
    %193 = memref.load %arg5[%c2_225, %c3_226] : memref<4x4xf32, #tpu.memory_space<smem>>
    %194 = vector.broadcast %193 : f32 to vector<8x16xf32>
    %195 = arith.mulf %192, %194 : vector<8x16xf32>
    %196 = arith.addf %190, %195 : vector<8x16xf32>
    %c2_227 = arith.constant 2 : index
    %197 = memref.load %arg6[%c2_227] : memref<4xf32, #tpu.memory_space<smem>>
    %198 = vector.broadcast %197 : f32 to vector<8x16xf32>
    %199 = arith.addf %196, %198 : vector<8x16xf32>
    %c0_228 = arith.constant 0 : index
    %c0_229 = arith.constant 0 : index
    %c2_230 = arith.constant 2 : index
    %c8_231 = arith.constant 8 : index
    %c0_232 = arith.constant 0 : index
    %200 = vector.load %arg7[%c0_228, %c0_229, %c2_230, %c8_231, %c0_232] : memref<1x1x4x16x16xf32, #tpu.memory_space<vmem>>, vector<1x1x1x8x16xf32>
    %201 = vector.shape_cast %200 : vector<1x1x1x8x16xf32> to vector<8x16xf32>
    %202 = vector.shape_cast %199 : vector<8x16xf32> to vector<1x1x1x8x16xf32>
    tpu.vector_store %arg7[%c0_228, %c0_229, %c2_230, %c8_231, %c0_232], %202 {strides = array<i32>} : memref<1x1x4x16x16xf32, #tpu.memory_space<vmem>>, vector<1x1x1x8x16xf32>,
    %c0_233 = arith.constant 0 : index
    %c0_234 = arith.constant 0 : index
    %c0_235 = arith.constant 0 : index
    %c8_236 = arith.constant 8 : index
    %c0_237 = arith.constant 0 : index
    %203 = vector.load %arg4[%c0_233, %c0_234, %c0_235, %c8_236, %c0_237] : memref<1x1x4x16x16xf32, #tpu.memory_space<vmem>>, vector<1x1x1x8x16xf32>
    %204 = vector.shape_cast %203 : vector<1x1x1x8x16xf32> to vector<8x16xf32>
    %c3_238 = arith.constant 3 : index
    %c0_239 = arith.constant 0 : index
    %205 = memref.load %arg5[%c3_238, %c0_239] : memref<4x4xf32, #tpu.memory_space<smem>>
    %206 = vector.broadcast %205 : f32 to vector<8x16xf32>
    %207 = arith.mulf %204, %206 : vector<8x16xf32>
    %c0_240 = arith.constant 0 : index
    %c0_241 = arith.constant 0 : index
    %c1_242 = arith.constant 1 : index
    %c8_243 = arith.constant 8 : index
    %c0_244 = arith.constant 0 : index
    %208 = vector.load %arg4[%c0_240, %c0_241, %c1_242, %c8_243, %c0_244] : memref<1x1x4x16x16xf32, #tpu.memory_space<vmem>>, vector<1x1x1x8x16xf32>
    %209 = vector.shape_cast %208 : vector<1x1x1x8x16xf32> to vector<8x16xf32>
    %c3_245 = arith.constant 3 : index
    %c1_246 = arith.constant 1 : index
    %210 = memref.load %arg5[%c3_245, %c1_246] : memref<4x4xf32, #tpu.memory_space<smem>>
    %211 = vector.broadcast %210 : f32 to vector<8x16xf32>
    %212 = arith.mulf %209, %211 : vector<8x16xf32>
    %213 = arith.addf %207, %212 : vector<8x16xf32>
    %c0_247 = arith.constant 0 : index
    %c0_248 = arith.constant 0 : index
    %c2_249 = arith.constant 2 : index
    %c8_250 = arith.constant 8 : index
    %c0_251 = arith.constant 0 : index
    %214 = vector.load %arg4[%c0_247, %c0_248, %c2_249, %c8_250, %c0_251] : memref<1x1x4x16x16xf32, #tpu.memory_space<vmem>>, vector<1x1x1x8x16xf32>
    %215 = vector.shape_cast %214 : vector<1x1x1x8x16xf32> to vector<8x16xf32>
    %c3_252 = arith.constant 3 : index
    %c2_253 = arith.constant 2 : index
    %216 = memref.load %arg5[%c3_252, %c2_253] : memref<4x4xf32, #tpu.memory_space<smem>>
    %217 = vector.broadcast %216 : f32 to vector<8x16xf32>
    %218 = arith.mulf %215, %217 : vector<8x16xf32>
    %219 = arith.addf %213, %218 : vector<8x16xf32>
    %c0_254 = arith.constant 0 : index
    %c0_255 = arith.constant 0 : index
    %c3_256 = arith.constant 3 : index
    %c8_257 = arith.constant 8 : index
    %c0_258 = arith.constant 0 : index
    %220 = vector.load %arg4[%c0_254, %c0_255, %c3_256, %c8_257, %c0_258] : memref<1x1x4x16x16xf32, #tpu.memory_space<vmem>>, vector<1x1x1x8x16xf32>
    %221 = vector.shape_cast %220 : vector<1x1x1x8x16xf32> to vector<8x16xf32>
    %c3_259 = arith.constant 3 : index
    %c3_260 = arith.constant 3 : index
    %222 = memref.load %arg5[%c3_259, %c3_260] : memref<4x4xf32, #tpu.memory_space<smem>>
    %223 = vector.broadcast %222 : f32 to vector<8x16xf32>
    %224 = arith.mulf %221, %223 : vector<8x16xf32>
    %225 = arith.addf %219, %224 : vector<8x16xf32>
    %c3_261 = arith.constant 3 : index
    %226 = memref.load %arg6[%c3_261] : memref<4xf32, #tpu.memory_space<smem>>
    %227 = vector.broadcast %226 : f32 to vector<8x16xf32>
    %228 = arith.addf %225, %227 : vector<8x16xf32>
    %c0_262 = arith.constant 0 : index
    %c0_263 = arith.constant 0 : index
    %c3_264 = arith.constant 3 : index
    %c8_265 = arith.constant 8 : index
    %c0_266 = arith.constant 0 : index
    %229 = vector.load %arg7[%c0_262, %c0_263, %c3_264, %c8_265, %c0_266] : memref<1x1x4x16x16xf32, #tpu.memory_space<vmem>>, vector<1x1x1x8x16xf32>
    %230 = vector.shape_cast %229 : vector<1x1x1x8x16xf32> to vector<8x16xf32>
    %231 = vector.shape_cast %228 : vector<8x16xf32> to vector<1x1x1x8x16xf32>
    tpu.vector_store %arg7[%c0_262, %c0_263, %c3_264, %c8_265, %c0_266], %231 {strides = array<i32>} : memref<1x1x4x16x16xf32, #tpu.memory_space<vmem>>, vector<1x1x1x8x16xf32>,
    return
  }
  func.func @transform_0(%arg0: i32, %arg1: i32, %arg2: i32, %arg3: i32) -> (i32, i32, i32, i32, i32) {
    %c0_i32 = arith.constant 0 : i32
    %c0_i32_0 = arith.constant 0 : i32
    return %arg0, %arg1, %c0_i32, %arg2, %arg3 : i32, i32, i32, i32, i32
  }
  func.func @transform_1(%arg0: i32, %arg1: i32, %arg2: i32, %arg3: i32) -> (i32, i32) {
    %c0_i32 = arith.constant 0 : i32
    %c0_i32_0 = arith.constant 0 : i32
    %c0_i32_1 = arith.constant 0 : i32
    return %c0_i32, %c0_i32_0 : i32, i32
  }
  func.func @transform_2(%arg0: i32, %arg1: i32, %arg2: i32, %arg3: i32) -> i32 {
    %c0_i32 = arith.constant 0 : i32
    %c0_i32_0 = arith.constant 0 : i32
    return %c0_i32 : i32
  }
  func.func @transform_3(%arg0: i32, %arg1: i32, %arg2: i32, %arg3: i32) -> (i32, i32, i32, i32, i32) {
    %c0_i32 = arith.constant 0 : i32
    %c0_i32_0 = arith.constant 0 : i32
    return %arg0, %arg1, %c0_i32, %arg2, %arg3 : i32, i32, i32, i32, i32
  }
}

</mosaic_0001>

<llo_original>
// kernel: tpu_custom_call.1
$region0: #{tpu_custom_call.1}
  #allocation0 [shape = 'u32[]', space=smem, size = 0x4, offset = 0x4, fixed_abs, tag = 'smem constant byte address 0x4 - core index']
  #allocation1 [shape = 'u32[144,128]{1,0:T(1,128)}', space=vmem, size = 0x12000, scoped, tag = 'internal scratch']
  %s0 = inlined_call_operand.hbm [shape: f32[2,2,4,16,16], index: 0, kind: input, shape index: {}]
  %s1 = inlined_call_operand.hbm [shape: f32[4,4], index: 1, kind: input, shape index: {}]
  %s2 = inlined_call_operand.vmem [shape: f32[4], index: 2, kind: input, shape index: {}]
  %s3 = inlined_call_operand.hbm [shape: f32[2,1,4,16,16], index: 3, kind: output, shape index: {}]
  %s4 = sld [smem:[#allocation0]]
  $region57: #{tpu_custom_call.1} parent=0
    _
  %s6 = ssub.s32 1, %s4
  %s7 = scalar_select 0, %s6, %s4
  $region1: #{tpu_custom_call.1} parent=0
    #allocation2 [shape = 'u8[65536]{0}', space=vmem, size = 0x10000, scoped, tag = 'input window, operand 0']
    #allocation3 [shape = 's32[2]{0}', space=sflag, size = 0x8, scoped, tag = 'scoped memory for tpu_custom_call.1']
    #allocation4 [shape = 's32[2]{0}', space=sflag, size = 0x8, scoped, tag = 'scoped memory for tpu_custom_call.1']
    #allocation5 [shape = 's32[2]{0}', space=sflag, size = 0x8, scoped, tag = 'scoped memory for tpu_custom_call.1']
    #allocation6 [shape = 's32[2]{0}', space=sflag, size = 0x8, scoped, tag = 'scoped memory for tpu_custom_call.1']
    #allocation7 [shape = 'u8[2048]{0}', space=smem, size = 0x800, scoped, tag = 'input window, operand 1, single buffered']
    #allocation8 [shape = 'u8[512]{0}', space=smem, size = 0x200, scoped, tag = 'input window, operand 2, single buffered']
    #allocation9 [shape = 'u8[65536]{0}', space=vmem, size = 0x10000, scoped, tag = 'output window, operand 0']
    %8 = vsyncpa [#allocation3], 0
    %s9 = scalar_lea.sflag [#allocation3], 1
    %10 = vsyncpa %s9, 0
    %11 = vsyncpa [#allocation5], 0
    %12 = vsyncpa [#allocation6], 0
    %13 = vsyncpa [#allocation4], 0
    %s14 = scalar_lea.sflag [#allocation4], 1
    %15 = vsyncpa %s14, 0
    loop: start=0, step=1, limit=4
    $region2: #{tpu_custom_call.1} parent=1 // loop_pre_header
      _
    $region3: #{tpu_custom_call.1} parent=1 // loop_header
      %s17 = sphi 0, %s21
      %p18 = scmp.ge.s32.totalorder %s17, 4
      %s24 = sphi 0, %s50
      %s25 = sphi 0, %s46
      %s26 = sphi 0, %s42
      %s27 = sphi 0, %s38
      %s28 = sphi 0, %s24
      %s29 = sphi 0, %s25
      %s30 = sphi 0, %s26
      %s31 = sphi 0, %s27
      %s32 = sphi 0, %s28
      %s33 = sphi 0, %s29
      %s34 = sphi 0, %s30
      %s35 = sphi 0, %s31
      %s59 = sphi 0, %s61
      %s62 = sphi 0, %s59
      %s63 = sphi 0, %s62
      %s79 = sphi 0, %s63
      %s83 = sphi 0, %s83
      %s85 = sphi 0, %s83
      %s86 = sphi 0, %s85
      %s100 = sphi 0, %s86
      %s104 = sphi 0, %s104
      %s106 = sphi 0, %s104
      %s107 = sphi 0, %s106
      %s121 = sphi 0, %s107
      %s133 = sphi 0, %s135
      %s136 = sphi 0, %s133
      %s137 = sphi 0, %s136
      %s153 = sphi 0, %s137
    $region4: #{tpu_custom_call.1} parent=1 // loop_header_branch
      %20 = sbr.rel (%p18) target = $region8
    $region5: #{tpu_custom_call.1} parent=1 // loop_body
      %s22 = ssub.s32 %s17, 1
      %s23 = ssub.s32 %s17, 2
      %s36 = sadd.s32 1, %s27
      %p37 = scmp.ge.s32.totalorder %s36, 1
      %s38 = scalar_select %p37, 0, %s36
      %s39 = sadd.s32 1, %s26
      %s40 = scalar_select %p37, %s39, %s26
      %p41 = scmp.ge.s32.totalorder %s40, 1
      %s42 = scalar_select %p41, 0, %s40
      %s43 = sadd.s32 1, %s25
      %s44 = scalar_select %p41, %s43, %s25
      %p45 = scmp.ge.s32.totalorder %s44, 1
      %s46 = scalar_select %p45, 0, %s44
      %s47 = sadd.s32 1, %s24
      %s48 = scalar_select %p45, %s47, %s24
      %p49 = scmp.ge.s32.totalorder %s48, 2
      %s50 = scalar_select %p49, 0, %s48
      %s51 = ssub.s32 %s24, %s50
      %s52 = ssub.s32 %s25, %s46
      %s53 = sor.u32 %s51, %s52
      %s54 = ssub.s32 %s26, %s42
      %s55 = sor.u32 %s53, %s54
      %s56 = ssub.s32 %s27, %s38
      %s57 = sor.u32 %s55, %s56
      %p58 = scmp.eq.s32.totalorder %s57, 0
      %s60 = sadd.s32 %s59, 1
      %s61 = scalar_select %p58, %s59, %s60
      %p64 = pneg %p58
      %p65 = scmp.eq.s32.totalorder %s17, 1
      %p66 = por %p64, %p65
      %p67 = scmp.ne.s32.totalorder %s59, %s62
      %p68 = scmp.eq.s32.totalorder %s17, 0
      %p69 = por %p67, %p68
      %p70 = scmp.ne.s32.totalorder %s59, %s62
      %p71 = scmp.eq.s32.totalorder %s22, 1
      %p72 = por %p70, %p71
      %p73 = scmp.ne.s32.totalorder %s62, %s63
      %p74 = scmp.eq.s32.totalorder %s22, 0
      %p75 = por %p73, %p74
      %p76 = scmp.ne.s32.totalorder %s62, %s63
      %p77 = scmp.eq.s32.totalorder %s23, 1
      %p78 = por %p76, %p77
      %p80 = scmp.ne.s32.totalorder %s63, %s79
      %p81 = scmp.eq.s32.totalorder %s23, 0
      %p82 = por %p80, %p81
      %s84 = sadd.s32 %s83, 1
      %p87 = scmp.eq.s32.totalorder %s17, 1
      %p88 = scmp.ne.s32.totalorder %s83, %s85
      %p89 = scmp.eq.s32.totalorder %s17, 0
      %p90 = por %p88, %p89
      %p91 = scmp.ne.s32.totalorder %s83, %s85
      %p92 = scmp.eq.s32.totalorder %s22, 1
      %p93 = por %p91, %p92
      %p94 = scmp.ne.s32.totalorder %s85, %s86
      %p95 = scmp.eq.s32.totalorder %s22, 0
      %p96 = por %p94, %p95
      %p97 = scmp.ne.s32.totalorder %s85, %s86
      %p98 = scmp.eq.s32.totalorder %s23, 1
      %p99 = por %p97, %p98
      %p101 = scmp.ne.s32.totalorder %s86, %s100
      %p102 = scmp.eq.s32.totalorder %s23, 0
      %p103 = por %p101, %p102
      %s105 = sadd.s32 %s104, 1
      %p108 = scmp.eq.s32.totalorder %s17, 1
      %p109 = scmp.ne.s32.totalorder %s104, %s106
      %p110 = scmp.eq.s32.totalorder %s17, 0
      %p111 = por %p109, %p110
      %p112 = scmp.ne.s32.totalorder %s104, %s106
      %p113 = scmp.eq.s32.totalorder %s22, 1
      %p114 = por %p112, %p113
      %p115 = scmp.ne.s32.totalorder %s106, %s107
      %p116 = scmp.eq.s32.totalorder %s22, 0
      %p117 = por %p115, %p116
      %p118 = scmp.ne.s32.totalorder %s106, %s107
      %p119 = scmp.eq.s32.totalorder %s23, 1
      %p120 = por %p118, %p119
      %p122 = scmp.ne.s32.totalorder %s107, %s121
      %p123 = scmp.eq.s32.totalorder %s23, 0
      %p124 = por %p122, %p123
      %s125 = ssub.s32 %s24, %s50
      %s126 = ssub.s32 %s25, %s46
      %s127 = sor.u32 %s125, %s126
      %s128 = ssub.s32 %s26, %s42
      %s129 = sor.u32 %s127, %s128
      %s130 = ssub.s32 %s27, %s38
      %s131 = sor.u32 %s129, %s130
      %p132 = scmp.eq.s32.totalorder %s131, 0
      %s134 = sadd.s32 %s133, 1
      %s135 = scalar_select %p132, %s133, %s134
      %p138 = pneg %p132
      %p139 = scmp.eq.s32.totalorder %s17, 1
      %p140 = por %p138, %p139
      %p141 = scmp.ne.s32.totalorder %s133, %s136
      %p142 = scmp.eq.s32.totalorder %s17, 0
      %p143 = por %p141, %p142
      %p144 = scmp.ne.s32.totalorder %s133, %s136
      %p145 = scmp.eq.s32.totalorder %s22, 1
      %p146 = por %p144, %p145
      %p147 = scmp.ne.s32.totalorder %s136, %s137
      %p148 = scmp.eq.s32.totalorder %s22, 0
      %p149 = por %p147, %p148
      %p150 = scmp.ne.s32.totalorder %s136, %s137
      %p151 = scmp.eq.s32.totalorder %s23, 1
      %p152 = por %p150, %p151
      %p154 = scmp.ne.s32.totalorder %s137, %s153
      %p155 = scmp.eq.s32.totalorder %s23, 0
      %p156 = por %p154, %p155
      %p157 = scmp.le.s32.totalorder 1, %s17
      %p158 = scmp.lt.s32.totalorder %s17, 3
      %p159 = pnand %p157, %p158
      %p160 = pneg %p159
      // Predicated region
      $region9: #{tpu_custom_call.1} parent=5 // pred_check
        _
      $region10: #{tpu_custom_call.1} parent=5 // pred_check_branch
        %162 = sbr.rel (%p159) target = $region12
      $region11: #{tpu_custom_call.1} parent=5 // pred_region
        %s163 = ssub.s32 %s17, 1
        // Predicated region
        $region13: #{tpu_custom_call.1} parent=11 // pred_check
          %p164 = pneg %p96
        $region14: #{tpu_custom_call.1} parent=11 // pred_check_branch
          %166 = sbr.rel (%p164) target = $region16
        $region15: #{tpu_custom_call.1} parent=11 // pred_region
          %s168 = ssub.s32 64, 64
          %169 = vsyncadd [#allocation5], %s168
          %172 = dma.hbm_to_smem %s1, 64, [#allocation7], [#allocation5]
        $region16: #{tpu_custom_call.1} parent=11 // pred_fallthru
          _
        // Predicated region
        $region17: #{tpu_custom_call.1} parent=11 // pred_check
          %p173 = pneg %p117
        $region18: #{tpu_custom_call.1} parent=11 // pred_check_branch
          %175 = sbr.rel (%p173) target = $region20
        $region19: #{tpu_custom_call.1} parent=11 // pred_region
          %s177 = ssub.s32 16, 16
          %178 = vsyncadd [#allocation6], %s177
          %s180 = sshll.u32 %s2, 4
          %s181 = int_to_ptr.vmem [resolvable:$true] %s180
          %183 = dma.vmem_to_smem %s181, 16, [#allocation8], [#allocation6]
        $region20: #{tpu_custom_call.1} parent=11 // pred_fallthru
          _
      $region12: #{tpu_custom_call.1} parent=5 // pred_fallthru
        _
      %p184 = scmp.lt.s32.totalorder %s17, 2
      // Predicated region
      $region21: #{tpu_custom_call.1} parent=5 // pred_check
        %p185 = pneg %p184
      $region22: #{tpu_custom_call.1} parent=5 // pred_check_branch
        %187 = sbr.rel (%p185) target = $region24
      $region23: #{tpu_custom_call.1} parent=5 // pred_region
        // Predicated region
        $region25: #{tpu_custom_call.1} parent=23 // pred_check
          %p188 = pneg %p69
        $region26: #{tpu_custom_call.1} parent=23 // pred_check_branch
          %190 = sbr.rel (%p188) target = $region28
        $region27: #{tpu_custom_call.1} parent=23 // pred_region
          %s191 = sand.u32 %s59, 1
          %s192 = scalar_lea.sflag [#allocation3], %s191
          %s193 = sand.u32 %s59, 1
          %s194 = smul.addr %s193, 64
          %s195 = scalar_lea.vmem [#allocation2], %s194
          %s196 = smul.u32 2, %s26
          %s198 = ssub.s32 1024, 1024
          %199 = vsyncadd %s192, %s198
          %s200 = sadd.s32 %s27, %s196
          %s201 = smul.addr %s25, 8
          %s202 = sadd.s32 %s200, %s201
          %s203 = smul.addr %s24, 16
          %s204 = sadd.s32 %s202, %s203
          %s205 = smul.addr %s204, 128
          %s206 = scalar_lea.hbm %s0, %s205
          %s207 = sshll.u32 %s195, 4
          %s208 = int_to_ptr.vmem [resolvable:$true] %s207
          %213 = dma.hbm_to_vmem [thread:$0]  %s206, 1024, %s208, %s192, 128, 128, 8
        $region28: #{tpu_custom_call.1} parent=23 // pred_fallthru
          _
      $region24: #{tpu_custom_call.1} parent=5 // pred_fallthru
        _
      %p214 = scmp.le.s32.totalorder 1, %s17
      %p215 = scmp.lt.s32.totalorder %s17, 3
      %p216 = pnand %p214, %p215
      %p217 = pneg %p216
      // Predicated region
      $region29: #{tpu_custom_call.1} parent=5 // pred_check
        _
      $region30: #{tpu_custom_call.1} parent=5 // pred_check_branch
        %219 = sbr.rel (%p216) target = $region32
      $region31: #{tpu_custom_call.1} parent=5 // pred_region
        %s220 = ssub.s32 %s17, 1
        %s221 = sand.u32 %s62, 1
        %s222 = scalar_lea.sflag [#allocation3], %s221
        %s223 = sand.u32 %s62, 1
        %s224 = smul.addr %s223, 64
        %s225 = scalar_lea.vmem [#allocation2], %s224
        // Predicated region
        $region33: #{tpu_custom_call.1} parent=31 // pred_check
          %p226 = pneg %p75
        $region34: #{tpu_custom_call.1} parent=31 // pred_check_branch
          %228 = sbr.rel (%p226) target = $region36
        $region35: #{tpu_custom_call.1} parent=31 // pred_region
          %229 = dma.done %s222, 1024
        $region36: #{tpu_custom_call.1} parent=31 // pred_fallthru
          _
        // Predicated region
        $region37: #{tpu_custom_call.1} parent=31 // pred_check
          %p230 = pneg %p96
        $region38: #{tpu_custom_call.1} parent=31 // pred_check_branch
          %232 = sbr.rel (%p230) target = $region40
        $region39: #{tpu_custom_call.1} parent=31 // pred_region
          %233 = dma.done [#allocation5], 64
        $region40: #{tpu_custom_call.1} parent=31 // pred_fallthru
          _
        // Predicated region
        $region41: #{tpu_custom_call.1} parent=31 // pred_check
          %p234 = pneg %p117
        $region42: #{tpu_custom_call.1} parent=31 // pred_check_branch
          %236 = sbr.rel (%p234) target = $region44
        $region43: #{tpu_custom_call.1} parent=31 // pred_region
          %237 = dma.done [#allocation6], 16
        $region44: #{tpu_custom_call.1} parent=31 // pred_fallthru
          _
        %238 = sfence
        %s239 = sand.u32 %s62, 1
        %s240 = scalar_lea.sflag [#allocation3], %s239
        %s241 = sand.u32 %s62, 1
        %s242 = smul.addr %s241, 64
        %s243 = scalar_lea.vmem [#allocation2], %s242
        %p244 = pneg %p75
        %p245 = pneg %p72
        %p246 = pneg %p96
        %p247 = pneg %p93
        %p248 = pneg %p117
        %p249 = pneg %p114
        %p250 = pneg %p149
        %p251 = pneg %p146
        %s252 = sand.u32 %s136, 1
        %s253 = scalar_lea.sflag [#allocation4], %s252
        %s254 = sand.u32 %s136, 1
        %s255 = smul.addr %s254, 64
        %s256 = scalar_lea.vmem [#allocation9], %s255
        %s257 = smul.u32 2, %s30
        %s258 = smul.u32 2, %s30
        %v259 = vld [vmem:[%s225] sm:$0xff]
        %s260 = sld [smem:[#allocation7]]
        %v261 = vstv %s260
        %v262 = vmul.f32 %v259, %v261
        %s263 = scalar_lea.vmem %s225, 16 [#allocation2]
        %v264 = vld [vmem:[%s263] sm:$0xff]
        %s265 = sld [smem:[#allocation7 + $0x1]]
        %v266 = vstv %s265
        %v267 = vmul.f32 %v264, %v266
        %v268 = vadd.f32 %v262, %v267
        %s269 = scalar_lea.vmem %s225, 32 [#allocation2]
        %v270 = vld [vmem:[%s269] sm:$0xff]
        %s271 = sld [smem:[#allocation7 + $0x2]]
        %v272 = vstv %s271
        %v273 = vmul.f32 %v270, %v272
        %v274 = vadd.f32 %v268, %v273
        %s275 = scalar_lea.vmem %s225, 48 [#allocation2]
        %v276 = vld [vmem:[%s275] sm:$0xff]
        %s277 = sld [smem:[#allocation7 + $0x3]]
        %v278 = vstv %s277
        %v279 = vmul.f32 %v276, %v278
        %v280 = vadd.f32 %v274, %v279
        %s281 = sld [smem:[#allocation8]]
        %v282 = vstv %s281
        %v283 = vadd.f32 %v280, %v282
        %vm284 = vcmask 130048
        %285 = vst.msk [vmem:[%s256] sm:$0xff] %vm284, %v283
        %v286 = vld [vmem:[%s225] sm:$0xff]
        %s287 = sld [smem:[#allocation7 + $0x80]]
        %v288 = vstv %s287
        %v289 = vmul.f32 %v286, %v288
        %v290 = vld [vmem:[%s263] sm:$0xff]
        %s291 = sld [smem:[#allocation7 + $0x81]]
        %v292 = vstv %s291
        %v293 = vmul.f32 %v290, %v292
        %v294 = vadd.f32 %v289, %v293
        %v295 = vld [vmem:[%s269] sm:$0xff]
        %s296 = sld [smem:[#allocation7 + $0x82]]
        %v297 = vstv %s296
        %v298 = vmul.f32 %v295, %v297
        %v299 = vadd.f32 %v294, %v298
        %v300 = vld [vmem:[%s275] sm:$0xff]
        %s301 = sld [smem:[#allocation7 + $0x83]]
        %v302 = vstv %s301
        %v303 = vmul.f32 %v300, %v302
        %v304 = vadd.f32 %v299, %v303
        %s305 = sld [smem:[#allocation8 + $0x1]]
        %v306 = vstv %s305
        %v307 = vadd.f32 %v304, %v306
        %s308 = scalar_lea.vmem %s256, 16 [#allocation9]
        %309 = vst.msk [vmem:[%s308] sm:$0xff] %vm284, %v307
        %v310 = vld [vmem:[%s225] sm:$0xff]
        %s311 = sld [smem:[#allocation7 + $0x100]]
        %v312 = vstv %s311
        %v313 = vmul.f32 %v310, %v312
        %v314 = vld [vmem:[%s263] sm:$0xff]
        %s315 = sld [smem:[#allocation7 + $0x101]]
        %v316 = vstv %s315
        %v317 = vmul.f32 %v314, %v316
        %v318 = vadd.f32 %v313, %v317
        %v319 = vld [vmem:[%s269] sm:$0xff]
        %s320 = sld [smem:[#allocation7 + $0x102]]
        %v321 = vstv %s320
        %v322 = vmul.f32 %v319, %v321
        %v323 = vadd.f32 %v318, %v322
        %v324 = vld [vmem:[%s275] sm:$0xff]
        %s325 = sld [smem:[#allocation7 + $0x103]]
        %v326 = vstv %s325
        %v327 = vmul.f32 %v324, %v326
        %v328 = vadd.f32 %v323, %v327
        %s329 = sld [smem:[#allocation8 + $0x2]]
        %v330 = vstv %s329
        %v331 = vadd.f32 %v328, %v330
        %s332 = scalar_lea.vmem %s256, 32 [#allocation9]
        %333 = vst.msk [vmem:[%s332] sm:$0xff] %vm284, %v331
        %v334 = vld [vmem:[%s225] sm:$0xff]
        %s335 = sld [smem:[#allocation7 + $0x180]]
        %v336 = vstv %s335
        %v337 = vmul.f32 %v334, %v336
        %v338 = vld [vmem:[%s263] sm:$0xff]
        %s339 = sld [smem:[#allocation7 + $0x181]]
        %v340 = vstv %s339
        %v341 = vmul.f32 %v338, %v340
        %v342 = vadd.f32 %v337, %v341
        %v343 = vld [vmem:[%s269] sm:$0xff]
        %s344 = sld [smem:[#allocation7 + $0x182]]
        %v345 = vstv %s344
        %v346 = vmul.f32 %v343, %v345
        %v347 = vadd.f32 %v342, %v346
        %v348 = vld [vmem:[%s275] sm:$0xff]
        %s349 = sld [smem:[#allocation7 + $0x183]]
        %v350 = vstv %s349
        %v351 = vmul.f32 %v348, %v350
        %v352 = vadd.f32 %v347, %v351
        %s353 = sld [smem:[#allocation8 + $0x3]]
        %v354 = vstv %s353
        %v355 = vadd.f32 %v352, %v354
        %s356 = scalar_lea.vmem %s256, 48 [#allocation9]
        %357 = vst.msk [vmem:[%s356] sm:$0xff] %vm284, %v355
        %v358 = vld [vmem:[%s225 + $0x8] sm:$0xff]
        %s359 = sld [smem:[#allocation7]]
        %v360 = vstv %s359
        %v361 = vmul.f32 %v358, %v360
        %v362 = vld [vmem:[%s263 + $0x8] sm:$0xff]
        %s363 = sld [smem:[#allocation7 + $0x1]]
        %v364 = vstv %s363
        %v365 = vmul.f32 %v362, %v364
        %v366 = vadd.f32 %v361, %v365
        %v367 = vld [vmem:[%s269 + $0x8] sm:$0xff]
        %s368 = sld [smem:[#allocation7 + $0x2]]
        %v369 = vstv %s368
        %v370 = vmul.f32 %v367, %v369
        %v371 = vadd.f32 %v366, %v370
        %v372 = vld [vmem:[%s275 + $0x8] sm:$0xff]
        %s373 = sld [smem:[#allocation7 + $0x3]]
        %v374 = vstv %s373
        %v375 = vmul.f32 %v372, %v374
        %v376 = vadd.f32 %v371, %v375
        %s377 = sld [smem:[#allocation8]]
        %v378 = vstv %s377
        %v379 = vadd.f32 %v376, %v378
        %380 = vst.msk [vmem:[%s256 + $0x8] sm:$0xff] %vm284, %v379
        %v381 = vld [vmem:[%s225 + $0x8] sm:$0xff]
        %s382 = sld [smem:[#allocation7 + $0x80]]
        %v383 = vstv %s382
        %v384 = vmul.f32 %v381, %v383
        %v385 = vld [vmem:[%s263 + $0x8] sm:$0xff]
        %s386 = sld [smem:[#allocation7 + $0x81]]
        %v387 = vstv %s386
        %v388 = vmul.f32 %v385, %v387
        %v389 = vadd.f32 %v384, %v388
        %v390 = vld [vmem:[%s269 + $0x8] sm:$0xff]
        %s391 = sld [smem:[#allocation7 + $0x82]]
        %v392 = vstv %s391
        %v393 = vmul.f32 %v390, %v392
        %v394 = vadd.f32 %v389, %v393
        %v395 = vld [vmem:[%s275 + $0x8] sm:$0xff]
        %s396 = sld [smem:[#allocation7 + $0x83]]
        %v397 = vstv %s396
        %v398 = vmul.f32 %v395, %v397
        %v399 = vadd.f32 %v394, %v398
        %s400 = sld [smem:[#allocation8 + $0x1]]
        %v401 = vstv %s400
        %v402 = vadd.f32 %v399, %v401
        %403 = vst.msk [vmem:[%s308 + $0x8] sm:$0xff] %vm284, %v402
        %v404 = vld [vmem:[%s225 + $0x8] sm:$0xff]
        %s405 = sld [smem:[#allocation7 + $0x100]]
        %v406 = vstv %s405
        %v407 = vmul.f32 %v404, %v406
        %v408 = vld [vmem:[%s263 + $0x8] sm:$0xff]
        %s409 = sld [smem:[#allocation7 + $0x101]]
        %v410 = vstv %s409
        %v411 = vmul.f32 %v408, %v410
        %v412 = vadd.f32 %v407, %v411
        %v413 = vld [vmem:[%s269 + $0x8] sm:$0xff]
        %s414 = sld [smem:[#allocation7 + $0x102]]
        %v415 = vstv %s414
        %v416 = vmul.f32 %v413, %v415
        %v417 = vadd.f32 %v412, %v416
        %v418 = vld [vmem:[%s275 + $0x8] sm:$0xff]
        %s419 = sld [smem:[#allocation7 + $0x103]]
        %v420 = vstv %s419
        %v421 = vmul.f32 %v418, %v420
        %v422 = vadd.f32 %v417, %v421
        %s423 = sld [smem:[#allocation8 + $0x2]]
        %v424 = vstv %s423
        %v425 = vadd.f32 %v422, %v424
        %426 = vst.msk [vmem:[%s332 + $0x8] sm:$0xff] %vm284, %v425
        %v427 = vld [vmem:[%s225 + $0x8] sm:$0xff]
        %s428 = sld [smem:[#allocation7 + $0x180]]
        %v429 = vstv %s428
        %v430 = vmul.f32 %v427, %v429
        %v431 = vld [vmem:[%s263 + $0x8] sm:$0xff]
        %s432 = sld [smem:[#allocation7 + $0x181]]
        %v433 = vstv %s432
        %v434 = vmul.f32 %v431, %v433
        %v435 = vadd.f32 %v430, %v434
        %v436 = vld [vmem:[%s269 + $0x8] sm:$0xff]
        %s437 = sld [smem:[#allocation7 + $0x182]]
        %v438 = vstv %s437
        %v439 = vmul.f32 %v436, %v438
        %v440 = vadd.f32 %v435, %v439
        %v441 = vld [vmem:[%s275 + $0x8] sm:$0xff]
        %s442 = sld [smem:[#allocation7 + $0x183]]
        %v443 = vstv %s442
        %v444 = vmul.f32 %v441, %v443
        %v445 = vadd.f32 %v440, %v444
        %s446 = sld [smem:[#allocation8 + $0x3]]
        %v447 = vstv %s446
        %v448 = vadd.f32 %v445, %v447
        %449 = vst.msk [vmem:[%s356 + $0x8] sm:$0xff] %vm284, %v448
        %s450 = sand.u32 %s136, 1
        %s451 = scalar_lea.sflag [#allocation4], %s450
        %s452 = sand.u32 %s136, 1
        %s453 = smul.addr %s452, 64
        %s454 = scalar_lea.vmem [#allocation9], %s453
        // Predicated region
        $region45: #{tpu_custom_call.1} parent=31 // pred_check
          %p455 = pneg %p146
        $region46: #{tpu_custom_call.1} parent=31 // pred_check_branch
          %457 = sbr.rel (%p455) target = $region48
        $region47: #{tpu_custom_call.1} parent=31 // pred_region
          %s458 = smul.u32 2, %s30
          %s460 = ssub.s32 1024, 1024
          %461 = vsyncadd %s451, %s460
          %s462 = sadd.s32 %s31, %s458
          %s463 = smul.addr %s29, 8
          %s464 = sadd.s32 %s462, %s463
          %s465 = smul.addr %s28, 8
          %s466 = sadd.s32 %s464, %s465
          %s467 = smul.addr %s466, 128
          %s468 = scalar_lea.hbm %s3, %s467
          %s469 = sshll.u32 %s454, 4
          %s470 = int_to_ptr.vmem [resolvable:$true] %s469
          %475 = dma.vmem_to_hbm [thread:$0]  %s470, 1024, %s468, %s451, 128, 128, 8
        $region48: #{tpu_custom_call.1} parent=31 // pred_fallthru
          _
      $region32: #{tpu_custom_call.1} parent=5 // pred_fallthru
        _
      %p476 = scmp.le.s32.totalorder 2, %s17
      // Predicated region
      $region49: #{tpu_custom_call.1} parent=5 // pred_check
        %p477 = pneg %p476
      $region50: #{tpu_custom_call.1} parent=5 // pred_check_branch
        %479 = sbr.rel (%p477) target = $region52
      $region51: #{tpu_custom_call.1} parent=5 // pred_region
        %s480 = ssub.s32 %s17, 2
        // Predicated region
        $region53: #{tpu_custom_call.1} parent=51 // pred_check
          %p481 = pneg %p152
        $region54: #{tpu_custom_call.1} parent=51 // pred_check_branch
          %483 = sbr.rel (%p481) target = $region56
        $region55: #{tpu_custom_call.1} parent=51 // pred_region
          %s484 = sand.u32 %s137, 1
          %s485 = scalar_lea.sflag [#allocation4], %s484
          %s486 = sand.u32 %s137, 1
          %s487 = smul.addr %s486, 64
          %s488 = scalar_lea.vmem [#allocation9], %s487
          %489 = dma.done %s485, 1024
        $region56: #{tpu_custom_call.1} parent=51 // pred_fallthru
          _
      $region52: #{tpu_custom_call.1} parent=5 // pred_fallthru
        _
    $region6: #{tpu_custom_call.1} parent=1 // loop_footer
      %s21 = sadd.s32 1, %s17
    $region7: #{tpu_custom_call.1} parent=1 // loop_footer_branch
      %16 = sbr.rel target = $region3
    $region8: #{tpu_custom_call.1} parent=1 // loop_exit
      _
    %490 = vsyncpa [#allocation3], 1
    %s491 = scalar_lea.sflag [#allocation3], 1
    %492 = vsyncpa %s491, 1
    %493 = vsyncpa [#allocation4], 1
    %s494 = scalar_lea.sflag [#allocation4], 1
    %495 = vsyncpa %s494, 1
    %496 = vsyncpa [#allocation5], 1
    %s497 = scalar_lea.sflag [#allocation5], 1
    %498 = vsyncpa %s497, 1
    %499 = vsyncpa [#allocation6], 1
    %s500 = scalar_lea.sflag [#allocation6], 1
    %501 = vsyncpa %s500, 1

</llo_original>
